<compile_context>
chip_gen: v7x
topology: tpu7x:2x2x1
jax: 0.10.0
libtpu: 0.0.40
codegen_flags: <defaults>
</compile_context>

<pallas_src>
import math
from functools import partial

import numpy as np
import jax
import jax.numpy as jnp
from jax import lax
from jax.experimental import pallas as pl
from jax.experimental.pallas import tpu as pltpu

# Model hyper-parameters (chosen so the module's forward is well-formed:
# the Linear layers act on the last dim of x1/x2, so dim_qkv == feature dim).
NUM_ATTENTION_HEADS = 1
DIM_QKV = 16          # feature dim D
B = 2                 # batch
SQ = 1                # query sequence length  (matches x1 = (.., 1, D))
SK = 8                # key/value sequence length (matches x2 = (.., 8, D))

# Note: v3.div(1/sqrt(d/h)) == v3 * sqrt(d/h)  -- reproduce exactly.
_SCALE = math.sqrt(DIM_QKV / NUM_ATTENTION_HEADS)          # = 4.0 (exact pow2)
_INV_SCALE_FACTOR = 1.0 / _SCALE

_NEG_BIG = -1e30  # masked-logit value (finite, avoids inf-inf corner cases)

# Contract the LAST dim of both operands -> y = x @ W^T with no transpose.
_DN_LAST_LAST = (((1,), (1,)), ((), ()))


def _attention_kernel(x1_ref, x2_ref, wq_ref, bq_ref, wk_ref, wv_ref, bias_ref,
                      o_ref, *, scale):
    # x1_ref:  (B*SQ, D)   flattened queries
    # x2_ref:  (B*SK, D)   flattened keys/values input
    # wq_ref:  (D, D)      raw PyTorch layout (out_features, in_features)
    # bq_ref:  (1, D)
    # wk_ref:  (D, D)      raw PyTorch layout
    # wv_ref:  (D, D)      raw PyTorch layout
    # bias_ref:(B*SQ, B*SK) block-diagonal additive mask (0 / -1e30), constant
    x1 = x1_ref[...]
    x2 = x2_ref[...]

    # Q projection (y = x @ W^T + b); sqrt(D/H) scale as one tiny VPU multiply.
    q = (lax.dot_general(x1, wq_ref[...], _DN_LAST_LAST,
                         preferred_element_type=jnp.float32)
         + bq_ref[...]) * scale

    # K / V projections (no bias).
    k = lax.dot_general(x2, wk_ref[...], _DN_LAST_LAST,
                        preferred_element_type=jnp.float32)
    v = lax.dot_general(x2, wv_ref[...], _DN_LAST_LAST,
                        preferred_element_type=jnp.float32)

    # Scores: contract last dims of q and k directly (no explicit transpose),
    # then add the constant block-diagonal batch mask (single vadd).
    s = lax.dot_general(q, k, _DN_LAST_LAST,
                        preferred_element_type=jnp.float32) + bias_ref[...]

    # Numerically stable softmax over the (masked) key axis. Exact division:
    # the EUP is idle anyway, and exact keeps full accuracy.
    m = jnp.max(s, axis=-1, keepdims=True)
    e = jnp.exp(s - m)                                    # masked cols -> 0
    p = e / jnp.sum(e, axis=-1, keepdims=True)

    # Dropout is identity in eval/inference mode (single forward pass).
    # TODO(synk): training-mode dropout not implemented (nn.Dropout(p=[]) is
    # malformed in the reference module anyway).

    # Output: masked attention weights are exactly 0, so cross-batch V rows do
    # not contribute. Single store of all outputs at once.
    o = jnp.dot(p, v, preferred_element_type=jnp.float32)  # (B*SQ, D)
    o_ref[...] = o.astype(o_ref.dtype)


@jax.jit
def attention_forward(x1, x2, wq, bq, wk, wv):
    """x1: (B, SQ, D), x2: (B, SK, D); weights in PyTorch layout (out, in)."""
    Bn, Sq, D = x1.shape
    _, Sk, _ = x2.shape
    nq, nk = Bn * Sq, Bn * Sk

    # Trace-time constant block-diagonal batch mask (0 on same-batch entries,
    # -1e30 across batches). Built with numpy -> baked into the executable as
    # a constant; no runtime op, just one tiny extra operand DMA.
    row_b = np.repeat(np.arange(Bn), Sq)                   # (nq,)
    col_b = np.repeat(np.arange(Bn), Sk)                   # (nk,)
    bias = np.where(row_b[:, None] == col_b[None, :], 0.0, _NEG_BIG)
    bias = bias.astype(np.float32)

    # Metadata-only reshapes (no data movement): flatten batch into rows.
    x1_2d = x1.reshape(nq, D)
    x2_2d = x2.reshape(nk, D)
    bq_2d = bq.reshape(1, D)

    kernel = partial(_attention_kernel, scale=_SCALE)

    # Advisory cost estimate for XLA's scheduler around the micro custom call.
    flops = 2 * (nq * D * D + 2 * nk * D * D + nq * nk * D + nq * nk * D)
    bytes_accessed = 4 * (nq * D + nk * D + 3 * D * D + D + nq * nk + nq * D)

    vmem_spec = pl.BlockSpec(memory_space=pltpu.MemorySpace.VMEM)

    out2d = pl.pallas_call(
        kernel,
        out_shape=jax.ShapeDtypeStruct((nq, D), x1.dtype),
        # No grid: whole problem in one invocation (working set is a few KiB,
        # far below VMEM on v5e/v6e/v7x); avoids all per-step pipeline
        # overhead and any cross-core coordination.
        in_specs=[vmem_spec] * 7,
        out_specs=vmem_spec,
        cost_estimate=pl.CostEstimate(
            flops=flops, transcendentals=nq * nk,
            bytes_accessed=bytes_accessed),
    )(x1_2d, x2_2d, wq, bq_2d, wk, wv, bias)

    return out2d.reshape(Bn, Sq, D)


def _reference(x1, x2, wq, bq, wk, wv):
    q = x1 @ wq.T + bq
    k = x2 @ wk.T
    v = x2 @ wv.T
    s = jnp.einsum("bqd,bkd->bqk", q, k) / _INV_SCALE_FACTOR
    p = jax.nn.softmax(s, axis=-1)
    return jnp.einsum("bqk,bkd->bqd", p, v)


if __name__ == "__main__":
    key = jax.random.PRNGKey(0)
    k_x1, k_x2, k_wq, k_bq, k_wk, k_wv = jax.random.split(key, 6)

    x1 = jax.random.normal(k_x1, (B, SQ, DIM_QKV), dtype=jnp.float32)
    x2 = jax.random.normal(k_x2, (B, SK, DIM_QKV), dtype=jnp.float32)

    # Deterministic parameter init (PyTorch Linear layout: (out, in)).
    bound = 1.0 / math.sqrt(DIM_QKV)
    wq = jax.random.uniform(k_wq, (DIM_QKV, DIM_QKV), jnp.float32, -bound, bound)
    bq = jax.random.uniform(k_bq, (DIM_QKV,), jnp.float32, -bound, bound)
    wk = jax.random.uniform(k_wk, (DIM_QKV, DIM_QKV), jnp.float32, -bound, bound)
    wv = jax.random.uniform(k_wv, (DIM_QKV, DIM_QKV), jnp.float32, -bound, bound)

    out = attention_forward(x1, x2, wq, bq, wk, wv)
    out = jax.block_until_ready(out)

    ref = _reference(x1, x2, wq, bq, wk, wv)
    assert out.shape == (B, SQ, DIM_QKV), out.shape
    # Softmax now uses exact division. The remaining tolerance headroom covers
    # MXU default f32 matmul precision differences vs the un-fused XLA
    # reference path (both are well within 2e-3 for these tiny shapes).
    assert jnp.allclose(out, ref, atol=2e-3, rtol=2e-3), "mismatch vs reference"

    print("KERNEL_OK")
</pallas_src>

<mosaic_0001>
module attributes {stable_mosaic.version = 11 : i64} {
  func.func @_attention_kernel(%arg0: memref<2x16xf32, #tpu.memory_space<vmem>>, %arg1: memref<16x16xf32, #tpu.memory_space<vmem>>, %arg2: memref<16x16xf32, #tpu.memory_space<vmem>>, %arg3: memref<1x16xf32, #tpu.memory_space<vmem>>, %arg4: memref<16x16xf32, #tpu.memory_space<vmem>>, %arg5: memref<16x16xf32, #tpu.memory_space<vmem>>, %arg6: memref<2x16xf32, #tpu.memory_space<vmem>>, %arg7: memref<2x16xf32, #tpu.memory_space<vmem>>) attributes {dimension_semantics = [], scalar_prefetch = 0 : i64, scratch_operands = 0 : i64, tpu.core_type = #tpu.core_type<tc>} {
    %c0 = arith.constant 0 : index
    %c0_0 = arith.constant 0 : index
    %0 = vector.load %arg0[%c0, %c0_0] : memref<2x16xf32, #tpu.memory_space<vmem>>, vector<2x16xf32>
    %c0_1 = arith.constant 0 : index
    %c0_2 = arith.constant 0 : index
    %1 = vector.load %arg1[%c0_1, %c0_2] : memref<16x16xf32, #tpu.memory_space<vmem>>, vector<16x16xf32>
    %c0_3 = arith.constant 0 : index
    %c0_4 = arith.constant 0 : index
    %2 = vector.load %arg2[%c0_3, %c0_4] : memref<16x16xf32, #tpu.memory_space<vmem>>, vector<16x16xf32>
    %cst = arith.constant dense<0.000000e+00> : vector<2x16xf32>
    %3 = tpu.matmul %0, %2, %cst {dimension_numbers = #tpu.dot_dimension_numbers<[1], [1], [0], [0], [0, 0, 1, 0], [], []>} : vector<2x16xf32>, vector<16x16xf32>, vector<2x16xf32> -> vector<2x16xf32>
    %c0_5 = arith.constant 0 : index
    %c0_6 = arith.constant 0 : index
    %4 = vector.load %arg3[%c0_5, %c0_6] : memref<1x16xf32, #tpu.memory_space<vmem>>, vector<1x16xf32>
    %5 = vector.broadcast %4 : vector<1x16xf32> to vector<2x16xf32>
    %6 = arith.addf %3, %5 : vector<2x16xf32>
    %cst_7 = arith.constant 4.000000e+00 : f32
    %7 = vector.broadcast %cst_7 : f32 to vector<2x16xf32>
    %8 = arith.mulf %6, %7 : vector<2x16xf32>
    %c0_8 = arith.constant 0 : index
    %c0_9 = arith.constant 0 : index
    %9 = vector.load %arg4[%c0_8, %c0_9] : memref<16x16xf32, #tpu.memory_space<vmem>>, vector<16x16xf32>
    %cst_10 = arith.constant dense<0.000000e+00> : vector<16x16xf32>
    %10 = tpu.matmul %1, %9, %cst_10 {dimension_numbers = #tpu.dot_dimension_numbers<[1], [1], [0], [0], [0, 0, 1, 0], [], []>} : vector<16x16xf32>, vector<16x16xf32>, vector<16x16xf32> -> vector<16x16xf32>
    %c0_11 = arith.constant 0 : index
    %c0_12 = arith.constant 0 : index
    %11 = vector.load %arg5[%c0_11, %c0_12] : memref<16x16xf32, #tpu.memory_space<vmem>>, vector<16x16xf32>
    %cst_13 = arith.constant dense<0.000000e+00> : vector<16x16xf32>
    %12 = tpu.matmul %1, %11, %cst_13 {dimension_numbers = #tpu.dot_dimension_numbers<[1], [1], [0], [0], [0, 0, 1, 0], [], []>} : vector<16x16xf32>, vector<16x16xf32>, vector<16x16xf32> -> vector<16x16xf32>
    %cst_14 = arith.constant dense<0.000000e+00> : vector<2x16xf32>
    %13 = tpu.matmul %8, %10, %cst_14 {dimension_numbers = #tpu.dot_dimension_numbers<[1], [1], [0], [0], [0, 0, 1, 0], [], []>} : vector<2x16xf32>, vector<16x16xf32>, vector<2x16xf32> -> vector<2x16xf32>
    %c0_15 = arith.constant 0 : index
    %c0_16 = arith.constant 0 : index
    %14 = vector.load %arg6[%c0_15, %c0_16] : memref<2x16xf32, #tpu.memory_space<vmem>>, vector<2x16xf32>
    %15 = arith.addf %13, %14 : vector<2x16xf32>
    %cst_17 = arith.constant dense<0xFF800000> : vector<2xf32>
    %16 = vector.multi_reduction <maximumf>, %15, %cst_17 [1] : vector<2x16xf32> to vector<2xf32>
    %17 = vector.shape_cast %16 : vector<2xf32> to vector<2x1xf32>
    %18 = vector.broadcast %17 : vector<2x1xf32> to vector<2x16xf32>
    %19 = arith.subf %15, %18 : vector<2x16xf32>
    %20 = math.exp %19 : vector<2x16xf32>
    %cst_18 = arith.constant dense<0.000000e+00> : vector<2xf32>
    %21 = vector.multi_reduction <add>, %20, %cst_18 [1] : vector<2x16xf32> to vector<2xf32>
    %22 = vector.shape_cast %21 : vector<2xf32> to vector<2x1xf32>
    %23 = vector.broadcast %22 : vector<2x1xf32> to vector<2x16xf32>
    %24 = arith.divf %20, %23 : vector<2x16xf32>
    %cst_19 = arith.constant dense<0.000000e+00> : vector<2x16xf32>
    %25 = tpu.matmul %24, %12, %cst_19 {dimension_numbers = #tpu.dot_dimension_numbers<[1], [0], [0], [1], [0, 0, 1, 1], [], []>} : vector<2x16xf32>, vector<16x16xf32>, vector<2x16xf32> -> vector<2x16xf32>
    %c0_20 = arith.constant 0 : index
    %c0_21 = arith.constant 0 : index
    %26 = vector.load %arg7[%c0_20, %c0_21] : memref<2x16xf32, #tpu.memory_space<vmem>>, vector<2x16xf32>
    tpu.vector_store %arg7[%c0_20, %c0_21], %25 {strides = array<i32>} : memref<2x16xf32, #tpu.memory_space<vmem>>, vector<2x16xf32>,
    return
  }
}

</mosaic_0001>

<llo_original>
// kernel: attention_forward.1
$region0: #{attention_forward.1}
  #allocation0 [shape = 'u32[]', space=smem, size = 0x4, offset = 0x4, fixed_abs, tag = 'smem constant byte address 0x4 - core index']
  #allocation1 [shape = 'u32[144,128]{1,0:T(1,128)}', space=vmem, size = 0x12000, scoped, tag = 'internal scratch']
  %s0 = inlined_call_operand.hbm [shape: f32[2,16], index: 0, kind: input, shape index: {}]
  %s1 = inlined_call_operand.hbm [shape: f32[16,16], index: 1, kind: input, shape index: {}]
  %s2 = inlined_call_operand.vmem [shape: f32[16,16], index: 2, kind: input, shape index: {}]
  %s3 = inlined_call_operand.vmem [shape: f32[1,16], index: 3, kind: input, shape index: {}]
  %s4 = inlined_call_operand.hbm [shape: f32[16,16], index: 4, kind: input, shape index: {}]
  %s5 = inlined_call_operand.hbm [shape: f32[16,16], index: 5, kind: input, shape index: {}]
  %s6 = inlined_call_operand.vmem [shape: f32[2,16], index: 6, kind: input, shape index: {}]
  %s7 = inlined_call_operand.hbm [shape: f32[2,16], index: 7, kind: output, shape index: {}]
  %s8 = sld [smem:[#allocation0]]
  $region54: #{attention_forward.1} parent=0
    _
  %s10 = ssub.s32 1, %s8
  %s11 = scalar_select 0, %s10, %s8
  $region1: #{attention_forward.1} parent=0
    #allocation2 [shape = 'u8[1024]{0}', space=vmem, size = 0x400, scoped, tag = 'input window, operand 0, single buffered']
    #allocation3 [shape = 's32[1]{0}', space=sflag, size = 0x4, scoped, tag = 'scoped memory for attention_forward.1']
    #allocation4 [shape = 's32[1]{0}', space=sflag, size = 0x4, scoped, tag = 'scoped memory for attention_forward.1']
    #allocation5 [shape = 'u8[8192]{0}', space=vmem, size = 0x2000, scoped, tag = 'input window, operand 1, single buffered']
    #allocation6 [shape = 's32[1]{0}', space=sflag, size = 0x4, scoped, tag = 'scoped memory for attention_forward.1']
    #allocation7 [shape = 'u8[8192]{0}', space=vmem, size = 0x2000, scoped, tag = 'input window, operand 4, single buffered']
    #allocation8 [shape = 'u8[8192]{0}', space=vmem, size = 0x2000, scoped, tag = 'input window, operand 5, single buffered']
    #allocation9 [shape = 's32[1]{0}', space=sflag, size = 0x4, scoped, tag = 'scoped memory for attention_forward.1']
    #allocation10 [shape = 'u8[1024]{0}', space=vmem, size = 0x400, scoped, tag = 'output window, operand 0, single buffered']
    %12 = vsyncpa [#allocation3], 0
    %13 = vsyncpa [#allocation6], 0
    %14 = vsyncpa [#allocation9], 0
    %15 = vsyncpa [#allocation4], 0
    // Predicated region
    $region2: #{attention_forward.1} parent=1 // pred_check
      _
    $region3: #{attention_forward.1} parent=1 // pred_check_branch
      %17 = sbr.rel (0) target = $region5
    $region4: #{attention_forward.1} parent=1 // pred_region
      %s19 = ssub.s32 32, 32
      %20 = vsyncadd [#allocation3], %s19
      %s22 = sshll.u32 [#allocation2], 4
      %s23 = int_to_ptr.vmem [resolvable:$true] %s22
      %25 = dma.hbm_to_vmem [thread:$0]  %s0, 32, %s23, [#allocation3]
    $region5: #{attention_forward.1} parent=1 // pred_fallthru
      _
    // Predicated region
    $region6: #{attention_forward.1} parent=1 // pred_check
      _
    $region7: #{attention_forward.1} parent=1 // pred_check_branch
      %27 = sbr.rel (0) target = $region9
    $region8: #{attention_forward.1} parent=1 // pred_region
      %s29 = ssub.s32 256, 256
      %30 = vsyncadd [#allocation6], %s29
      %s31 = sshll.u32 [#allocation5], 4
      %s32 = int_to_ptr.vmem [resolvable:$true] %s31
      %37 = dma.hbm_to_vmem [thread:$0]  %s1, 256, %s32, [#allocation6], 128, 128, 8
    $region9: #{attention_forward.1} parent=1 // pred_fallthru
      _
    // Predicated region
    $region10: #{attention_forward.1} parent=1 // pred_check
      _
    $region11: #{attention_forward.1} parent=1 // pred_check_branch
      %39 = sbr.rel (0) target = $region13
    $region12: #{attention_forward.1} parent=1 // pred_region
      _
    $region13: #{attention_forward.1} parent=1 // pred_fallthru
      _
    // Predicated region
    $region14: #{attention_forward.1} parent=1 // pred_check
      _
    $region15: #{attention_forward.1} parent=1 // pred_check_branch
      %41 = sbr.rel (0) target = $region17
    $region16: #{attention_forward.1} parent=1 // pred_region
      _
    $region17: #{attention_forward.1} parent=1 // pred_fallthru
      _
    // Predicated region
    $region18: #{attention_forward.1} parent=1 // pred_check
      _
    $region19: #{attention_forward.1} parent=1 // pred_check_branch
      %43 = sbr.rel (0) target = $region21
    $region20: #{attention_forward.1} parent=1 // pred_region
      %s45 = ssub.s32 256, 256
      %46 = vsyncadd [#allocation6], %s45
      %s47 = sshll.u32 [#allocation7], 4
      %s48 = int_to_ptr.vmem [resolvable:$true] %s47
      %53 = dma.hbm_to_vmem [thread:$0]  %s4, 256, %s48, [#allocation6], 128, 128, 8
    $region21: #{attention_forward.1} parent=1 // pred_fallthru
      _
    // Predicated region
    $region22: #{attention_forward.1} parent=1 // pred_check
      _
    $region23: #{attention_forward.1} parent=1 // pred_check_branch
      %55 = sbr.rel (0) target = $region25
    $region24: #{attention_forward.1} parent=1 // pred_region
      %s57 = ssub.s32 256, 256
      %58 = vsyncadd [#allocation9], %s57
      %s59 = sshll.u32 [#allocation8], 4
      %s60 = int_to_ptr.vmem [resolvable:$true] %s59
      %65 = dma.hbm_to_vmem [thread:$0]  %s5, 256, %s60, [#allocation9], 128, 128, 8
    $region25: #{attention_forward.1} parent=1 // pred_fallthru
      _
    // Predicated region
    $region26: #{attention_forward.1} parent=1 // pred_check
      _
    $region27: #{attention_forward.1} parent=1 // pred_check_branch
      %67 = sbr.rel (0) target = $region29
    $region28: #{attention_forward.1} parent=1 // pred_region
      _
    $region29: #{attention_forward.1} parent=1 // pred_fallthru
      _
    // Predicated region
    $region30: #{attention_forward.1} parent=1 // pred_check
      _
    $region31: #{attention_forward.1} parent=1 // pred_check_branch
      %69 = sbr.rel (0) target = $region33
    $region32: #{attention_forward.1} parent=1 // pred_region
      %70 = dma.done [#allocation3], 32
    $region33: #{attention_forward.1} parent=1 // pred_fallthru
      _
    // Predicated region
    $region34: #{attention_forward.1} parent=1 // pred_check
      _
    $region35: #{attention_forward.1} parent=1 // pred_check_branch
      %72 = sbr.rel (0) target = $region37
    $region36: #{attention_forward.1} parent=1 // pred_region
      %73 = dma.done [#allocation6], 256
    $region37: #{attention_forward.1} parent=1 // pred_fallthru
      _
    // Predicated region
    $region38: #{attention_forward.1} parent=1 // pred_check
      _
    $region39: #{attention_forward.1} parent=1 // pred_check_branch
      %75 = sbr.rel (0) target = $region41
    $region40: #{attention_forward.1} parent=1 // pred_region
      %76 = dma.done [#allocation6], 256
    $region41: #{attention_forward.1} parent=1 // pred_fallthru
      _
    // Predicated region
    $region42: #{attention_forward.1} parent=1 // pred_check
      _
    $region43: #{attention_forward.1} parent=1 // pred_check_branch
      %78 = sbr.rel (0) target = $region45
    $region44: #{attention_forward.1} parent=1 // pred_region
      %79 = dma.done [#allocation9], 256
    $region45: #{attention_forward.1} parent=1 // pred_fallthru
      _
    %v80 = vld [vmem:[#allocation2] sm:$0x3]
    %v81 = vld [vmem:[#allocation5] sm:$0xff]
    %v82 = vld [vmem:[#allocation5 + $0x8] sm:$0xff]
    %v83 = vld [vmem:[%s2] sm:$0xff]
    %v84 = vld [vmem:[%s2 + $0x8] sm:$0xff]
    %v85 = vld [vmem:[%s3] sm:$0x1]
    %v87 = vlaneseq
    %v88 = vshrl.u32 %v87, 7
    %v89 = vsub.s32 0, %v88
    %v90 = vrot.slane %v85, %v89
    %vm92 = vcmask 130048
    %v94 = vsel %vm92, %v80, 0
    %v97 = vsel %vm92, %v83, 0
    %v100 = vsel %vm92, %v84, 0
    %102 = vmatprep.subr.mxu0 0.0
    %103 = vmatpush1.xpose.msra.mxu0 %v97
    %104 = vmatprep.subr.mxu0 0.0
    %105 = vmatpush1.xpose.msra.mxu0 %v100
    %106 = vmatprep.subr.mxu0 0.0
    %107 = vmatpush1.xpose.msra.mxu0 0.0
    %108 = vmatprep.subr.mxu0 0.0
    %109 = vmatpush1.xpose.msra.mxu0 0.0
    %110 = vmatprep.subr.mxu0 0.0
    %111 = vmatpush1.xpose.msra.mxu0 0.0
    %112 = vmatprep.subr.mxu0 0.0
    %113 = vmatpush1.xpose.msra.mxu0 0.0
    %114 = vmatprep.subr.mxu0 0.0
    %115 = vmatpush1.xpose.msra.mxu0 0.0
    %116 = vmatprep.subr.mxu0 0.0
    %117 = vmatpush1.xpose.msra.mxu0 0.0
    %118 = vmatprep.subr.mxu0 0.0
    %119 = vmatpush1.xpose.msra.mxu0 0.0
    %120 = vmatprep.subr.mxu0 0.0
    %121 = vmatpush1.xpose.msra.mxu0 0.0
    %122 = vmatprep.subr.mxu0 0.0
    %123 = vmatpush1.xpose.msra.mxu0 0.0
    %124 = vmatprep.subr.mxu0 0.0
    %125 = vmatpush1.xpose.msra.mxu0 0.0
    %126 = vmatprep.subr.mxu0 0.0
    %127 = vmatpush1.xpose.msra.mxu0 0.0
    %128 = vmatprep.subr.mxu0 0.0
    %129 = vmatpush1.xpose.msra.mxu0 0.0
    %130 = vmatprep.subr.mxu0 0.0
    %131 = vmatpush1.xpose.msra.mxu0 0.0
    %132 = vmatprep.subr.mxu0 0.0
    %133 = vmatpush1.xpose.msra.mxu0 0.0
    %134 = vmatprep.subr.mxu0 0.0
    %135 = vmatpush1.xpose.msra.mxu0 0.0
    %136 = vmatprep.subr.mxu0 0.0
    %137 = vmatpush1.xpose.msra.mxu0 0.0
    %138 = vmatprep.subr.mxu0 0.0
    %139 = vmatpush1.xpose.msra.mxu0 0.0
    %140 = vmatprep.subr.mxu0 0.0
    %141 = vmatpush1.xpose.msra.mxu0 0.0
    %142 = vmatprep.subr.mxu0 0.0
    %143 = vmatpush1.xpose.msra.mxu0 0.0
    %144 = vmatprep.subr.mxu0 0.0
    %145 = vmatpush1.xpose.msra.mxu0 0.0
    %146 = vmatprep.subr.mxu0 0.0
    %147 = vmatpush1.xpose.msra.mxu0 0.0
    %148 = vmatprep.subr.mxu0 0.0
    %149 = vmatpush1.xpose.msra.mxu0 0.0
    %150 = vmatprep.subr.mxu0 0.0
    %151 = vmatpush1.xpose.msra.mxu0 0.0
    %152 = vmatprep.subr.mxu0 0.0
    %153 = vmatpush1.xpose.msra.mxu0 0.0
    %154 = vmatprep.subr.mxu0 0.0
    %155 = vmatpush1.xpose.msra.mxu0 0.0
    %156 = vmatprep.subr.mxu0 0.0
    %157 = vmatpush1.xpose.msra.mxu0 0.0
    %158 = vmatprep.subr.mxu0 0.0
    %159 = vmatpush1.xpose.msra.mxu0 0.0
    %160 = vmatprep.subr.mxu0 0.0
    %161 = vmatpush1.xpose.msra.mxu0 0.0
    %162 = vmatprep.subr.mxu0 0.0
    %163 = vmatpush1.xpose.msra.mxu0 0.0
    %164 = vmatprep.subr.mxu0 0.0
    %165 = vmatpush1.xpose.msra.mxu0 0.0
    %166 = vmatprep.mubr.f32.mxu0 0.0
    %167 = vmatmul.mubr.f32.gmra.mrb[0].mxu0 %v94
    %v168 = vpop.f32.mrb[0].mxu0
    %v169 = vadd.f32 %v90, %v168
    %v170 = vpop.f32.mrb[0].mxu0
    %171 = vdwg.mxu0
    %v172 = vmul.f32 %v169, 4.0
    %v173 = vld [vmem:[#allocation7] sm:$0xff]
    %v174 = vld [vmem:[#allocation7 + $0x8] sm:$0xff]
    %v176 = vsel %vm92, %v81, 0
    %v179 = vsel %vm92, %v82, 0
    %v182 = vsel %vm92, %v173, 0
    %v185 = vsel %vm92, %v174, 0
    %187 = vmatprep.subr.mxu0 0.0
    %188 = vmatpush1.xpose.msra.mxu0 %v182
    %189 = vmatprep.subr.mxu0 0.0
    %190 = vmatpush1.xpose.msra.mxu0 %v185
    %191 = vmatprep.subr.mxu0 0.0
    %192 = vmatpush1.xpose.msra.mxu0 0.0
    %193 = vmatprep.subr.mxu0 0.0
    %194 = vmatpush1.xpose.msra.mxu0 0.0
    %195 = vmatprep.subr.mxu0 0.0
    %196 = vmatpush1.xpose.msra.mxu0 0.0
    %197 = vmatprep.subr.mxu0 0.0
    %198 = vmatpush1.xpose.msra.mxu0 0.0
    %199 = vmatprep.subr.mxu0 0.0
    %200 = vmatpush1.xpose.msra.mxu0 0.0
    %201 = vmatprep.subr.mxu0 0.0
    %202 = vmatpush1.xpose.msra.mxu0 0.0
    %203 = vmatprep.subr.mxu0 0.0
    %204 = vmatpush1.xpose.msra.mxu0 0.0
    %205 = vmatprep.subr.mxu0 0.0
    %206 = vmatpush1.xpose.msra.mxu0 0.0
    %207 = vmatprep.subr.mxu0 0.0
    %208 = vmatpush1.xpose.msra.mxu0 0.0
    %209 = vmatprep.subr.mxu0 0.0
    %210 = vmatpush1.xpose.msra.mxu0 0.0
    %211 = vmatprep.subr.mxu0 0.0
    %212 = vmatpush1.xpose.msra.mxu0 0.0
    %213 = vmatprep.subr.mxu0 0.0
    %214 = vmatpush1.xpose.msra.mxu0 0.0
    %215 = vmatprep.subr.mxu0 0.0
    %216 = vmatpush1.xpose.msra.mxu0 0.0
    %217 = vmatprep.subr.mxu0 0.0
    %218 = vmatpush1.xpose.msra.mxu0 0.0
    %219 = vmatprep.subr.mxu0 0.0
    %220 = vmatpush1.xpose.msra.mxu0 0.0
    %221 = vmatprep.subr.mxu0 0.0
    %222 = vmatpush1.xpose.msra.mxu0 0.0
    %223 = vmatprep.subr.mxu0 0.0
    %224 = vmatpush1.xpose.msra.mxu0 0.0
    %225 = vmatprep.subr.mxu0 0.0
    %226 = vmatpush1.xpose.msra.mxu0 0.0
    %227 = vmatprep.subr.mxu0 0.0
    %228 = vmatpush1.xpose.msra.mxu0 0.0
    %229 = vmatprep.subr.mxu0 0.0
    %230 = vmatpush1.xpose.msra.mxu0 0.0
    %231 = vmatprep.subr.mxu0 0.0
    %232 = vmatpush1.xpose.msra.mxu0 0.0
    %233 = vmatprep.subr.mxu0 0.0
    %234 = vmatpush1.xpose.msra.mxu0 0.0
    %235 = vmatprep.subr.mxu0 0.0
    %236 = vmatpush1.xpose.msra.mxu0 0.0
    %237 = vmatprep.subr.mxu0 0.0
    %238 = vmatpush1.xpose.msra.mxu0 0.0
    %239 = vmatprep.subr.mxu0 0.0
    %240 = vmatpush1.xpose.msra.mxu0 0.0
    %241 = vmatprep.subr.mxu0 0.0
    %242 = vmatpush1.xpose.msra.mxu0 0.0
    %243 = vmatprep.subr.mxu0 0.0
    %244 = vmatpush1.xpose.msra.mxu0 0.0
    %245 = vmatprep.subr.mxu0 0.0
    %246 = vmatpush1.xpose.msra.mxu0 0.0
    %247 = vmatprep.subr.mxu0 0.0
    %248 = vmatpush1.xpose.msra.mxu0 0.0
    %249 = vmatprep.subr.mxu0 0.0
    %250 = vmatpush1.xpose.msra.mxu0 0.0
    %251 = vmatprep.mubr.f32.mxu0 0.0
    %252 = vmatmul.mubr.f32.gmra.mrb[0].mxu0 %v176
    %v253 = vpop.f32.mrb[0].mxu0
    %v254 = vadd.f32 0.0, %v253
    %v255 = vpop.f32.mrb[0].mxu0
    %256 = vmatprep.mubr.f32.mxu0 0.0
    %257 = vmatmul.mubr.f32.gmra.mrb[0].mxu0 %v179
    %v258 = vpop.f32.mrb[0].mxu0
    %v259 = vadd.f32 0.0, %v258
    %v260 = vpop.f32.mrb[0].mxu0
    %261 = vdwg.mxu0
    %v262 = vld [vmem:[#allocation8] sm:$0xff]
    %v263 = vld [vmem:[#allocation8 + $0x8] sm:$0xff]
    %v265 = vsel %vm92, %v262, 0
    %v268 = vsel %vm92, %v263, 0
    %270 = vmatprep.subr.mxu0 0.0
    %271 = vmatpush1.xpose.msra.mxu0 %v265
    %272 = vmatprep.subr.mxu0 0.0
    %273 = vmatpush1.xpose.msra.mxu0 %v268
    %274 = vmatprep.subr.mxu0 0.0
    %275 = vmatpush1.xpose.msra.mxu0 0.0
    %276 = vmatprep.subr.mxu0 0.0
    %277 = vmatpush1.xpose.msra.mxu0 0.0
    %278 = vmatprep.subr.mxu0 0.0
    %279 = vmatpush1.xpose.msra.mxu0 0.0
    %280 = vmatprep.subr.mxu0 0.0
    %281 = vmatpush1.xpose.msra.mxu0 0.0
    %282 = vmatprep.subr.mxu0 0.0
    %283 = vmatpush1.xpose.msra.mxu0 0.0
    %284 = vmatprep.subr.mxu0 0.0
    %285 = vmatpush1.xpose.msra.mxu0 0.0
    %286 = vmatprep.subr.mxu0 0.0
    %287 = vmatpush1.xpose.msra.mxu0 0.0
    %288 = vmatprep.subr.mxu0 0.0
    %289 = vmatpush1.xpose.msra.mxu0 0.0
    %290 = vmatprep.subr.mxu0 0.0
    %291 = vmatpush1.xpose.msra.mxu0 0.0
    %292 = vmatprep.subr.mxu0 0.0
    %293 = vmatpush1.xpose.msra.mxu0 0.0
    %294 = vmatprep.subr.mxu0 0.0
    %295 = vmatpush1.xpose.msra.mxu0 0.0
    %296 = vmatprep.subr.mxu0 0.0
    %297 = vmatpush1.xpose.msra.mxu0 0.0
    %298 = vmatprep.subr.mxu0 0.0
    %299 = vmatpush1.xpose.msra.mxu0 0.0
    %300 = vmatprep.subr.mxu0 0.0
    %301 = vmatpush1.xpose.msra.mxu0 0.0
    %302 = vmatprep.subr.mxu0 0.0
    %303 = vmatpush1.xpose.msra.mxu0 0.0
    %304 = vmatprep.subr.mxu0 0.0
    %305 = vmatpush1.xpose.msra.mxu0 0.0
    %306 = vmatprep.subr.mxu0 0.0
    %307 = vmatpush1.xpose.msra.mxu0 0.0
    %308 = vmatprep.subr.mxu0 0.0
    %309 = vmatpush1.xpose.msra.mxu0 0.0
    %310 = vmatprep.subr.mxu0 0.0
    %311 = vmatpush1.xpose.msra.mxu0 0.0
    %312 = vmatprep.subr.mxu0 0.0
    %313 = vmatpush1.xpose.msra.mxu0 0.0
    %314 = vmatprep.subr.mxu0 0.0
    %315 = vmatpush1.xpose.msra.mxu0 0.0
    %316 = vmatprep.subr.mxu0 0.0
    %317 = vmatpush1.xpose.msra.mxu0 0.0
    %318 = vmatprep.subr.mxu0 0.0
    %319 = vmatpush1.xpose.msra.mxu0 0.0
    %320 = vmatprep.subr.mxu0 0.0
    %321 = vmatpush1.xpose.msra.mxu0 0.0
    %322 = vmatprep.subr.mxu0 0.0
    %323 = vmatpush1.xpose.msra.mxu0 0.0
    %324 = vmatprep.subr.mxu0 0.0
    %325 = vmatpush1.xpose.msra.mxu0 0.0
    %326 = vmatprep.subr.mxu0 0.0
    %327 = vmatpush1.xpose.msra.mxu0 0.0
    %328 = vmatprep.subr.mxu0 0.0
    %329 = vmatpush1.xpose.msra.mxu0 0.0
    %330 = vmatprep.subr.mxu0 0.0
    %331 = vmatpush1.xpose.msra.mxu0 0.0
    %332 = vmatprep.subr.mxu0 0.0
    %333 = vmatpush1.xpose.msra.mxu0 0.0
    %334 = vmatprep.mubr.f32.mxu0 0.0
    %335 = vmatmul.mubr.f32.gmra.mrb[0].mxu0 %v176
    %v336 = vpop.f32.mrb[0].mxu0
    %v337 = vadd.f32 0.0, %v336
    %v338 = vpop.f32.mrb[0].mxu0
    %339 = vmatprep.mubr.f32.mxu0 0.0
    %340 = vmatmul.mubr.f32.gmra.mrb[0].mxu0 %v179
    %v341 = vpop.f32.mrb[0].mxu0
    %v342 = vadd.f32 0.0, %v341
    %v343 = vpop.f32.mrb[0].mxu0
    %344 = vdwg.mxu0
    %v345 = vld [vmem:[%s6] sm:$0x3]
    %v347 = vsel %vm92, %v172, 0
    %v350 = vsel %vm92, %v254, 0
    %v353 = vsel %vm92, %v259, 0
    %355 = vmatprep.subr.mxu0 0.0
    %356 = vmatpush1.xpose.msra.mxu0 %v350
    %357 = vmatprep.subr.mxu0 0.0
    %358 = vmatpush1.xpose.msra.mxu0 %v353
    %359 = vmatprep.subr.mxu0 0.0
    %360 = vmatpush1.xpose.msra.mxu0 0.0
    %361 = vmatprep.subr.mxu0 0.0
    %362 = vmatpush1.xpose.msra.mxu0 0.0
    %363 = vmatprep.subr.mxu0 0.0
    %364 = vmatpush1.xpose.msra.mxu0 0.0
    %365 = vmatprep.subr.mxu0 0.0
    %366 = vmatpush1.xpose.msra.mxu0 0.0
    %367 = vmatprep.subr.mxu0 0.0
    %368 = vmatpush1.xpose.msra.mxu0 0.0
    %369 = vmatprep.subr.mxu0 0.0
    %370 = vmatpush1.xpose.msra.mxu0 0.0
    %371 = vmatprep.subr.mxu0 0.0
    %372 = vmatpush1.xpose.msra.mxu0 0.0
    %373 = vmatprep.subr.mxu0 0.0
    %374 = vmatpush1.xpose.msra.mxu0 0.0
    %375 = vmatprep.subr.mxu0 0.0
    %376 = vmatpush1.xpose.msra.mxu0 0.0
    %377 = vmatprep.subr.mxu0 0.0
    %378 = vmatpush1.xpose.msra.mxu0 0.0
    %379 = vmatprep.subr.mxu0 0.0
    %380 = vmatpush1.xpose.msra.mxu0 0.0
    %381 = vmatprep.subr.mxu0 0.0
    %382 = vmatpush1.xpose.msra.mxu0 0.0
    %383 = vmatprep.subr.mxu0 0.0
    %384 = vmatpush1.xpose.msra.mxu0 0.0
    %385 = vmatprep.subr.mxu0 0.0
    %386 = vmatpush1.xpose.msra.mxu0 0.0
    %387 = vmatprep.subr.mxu0 0.0
    %388 = vmatpush1.xpose.msra.mxu0 0.0
    %389 = vmatprep.subr.mxu0 0.0
    %390 = vmatpush1.xpose.msra.mxu0 0.0
    %391 = vmatprep.subr.mxu0 0.0
    %392 = vmatpush1.xpose.msra.mxu0 0.0
    %393 = vmatprep.subr.mxu0 0.0
    %394 = vmatpush1.xpose.msra.mxu0 0.0
    %395 = vmatprep.subr.mxu0 0.0
    %396 = vmatpush1.xpose.msra.mxu0 0.0
    %397 = vmatprep.subr.mxu0 0.0
    %398 = vmatpush1.xpose.msra.mxu0 0.0
    %399 = vmatprep.subr.mxu0 0.0
    %400 = vmatpush1.xpose.msra.mxu0 0.0
    %401 = vmatprep.subr.mxu0 0.0
    %402 = vmatpush1.xpose.msra.mxu0 0.0
    %403 = vmatprep.subr.mxu0 0.0
    %404 = vmatpush1.xpose.msra.mxu0 0.0
    %405 = vmatprep.subr.mxu0 0.0
    %406 = vmatpush1.xpose.msra.mxu0 0.0
    %407 = vmatprep.subr.mxu0 0.0
    %408 = vmatpush1.xpose.msra.mxu0 0.0
    %409 = vmatprep.subr.mxu0 0.0
    %410 = vmatpush1.xpose.msra.mxu0 0.0
    %411 = vmatprep.subr.mxu0 0.0
    %412 = vmatpush1.xpose.msra.mxu0 0.0
    %413 = vmatprep.subr.mxu0 0.0
    %414 = vmatpush1.xpose.msra.mxu0 0.0
    %415 = vmatprep.subr.mxu0 0.0
    %416 = vmatpush1.xpose.msra.mxu0 0.0
    %417 = vmatprep.subr.mxu0 0.0
    %418 = vmatpush1.xpose.msra.mxu0 0.0
    %419 = vmatprep.mubr.f32.mxu0 0.0
    %420 = vmatmul.mubr.f32.gmra.mrb[0].mxu0 %v347
    %v421 = vpop.f32.mrb[0].mxu0
    %v422 = vadd.f32 %v345, %v421
    %v423 = vpop.f32.mrb[0].mxu0
    %424 = vdwg.mxu0
    %vm425 = vcmask 123904
    %v426 = vsel %vm425, %v422, -inf
    %427 = vmax.xlane.f32.xlu0 %v426
    %v428 = vpop.xlane.xlu0 %427
    %v429 = vsub.f32 %v422, %v428
    %v430 = vmul.f32 %v429, 1.442695
    %v431 = vpow.pop %v430
    %v432 = vsel %vm425, %v431, 0.0
    %433 = vadd.xlane.f32.xlu0 %v432
    %v434 = vpop.xlane.xlu0 %433
    %v435 = vrcp.pop %v434
    %v436 = vmul.f32 %v431, %v435
    %v438 = vsel %vm92, %v436, 0
    %440 = vmatprep.subr.mxu0 0.0
    %441 = vmatpush1.msra.mxu0 %v337
    %442 = vmatprep.subr.mxu0 0.0
    %443 = vmatpush1.msra.mxu0 %v342
    %444 = vmatprep.subr.mxu0 0.0
    %445 = vmatpush1.msra.mxu0 0.0
    %446 = vmatprep.subr.mxu0 0.0
    %447 = vmatpush1.msra.mxu0 0.0
    %448 = vmatprep.subr.mxu0 0.0
    %449 = vmatpush1.msra.mxu0 0.0
    %450 = vmatprep.subr.mxu0 0.0
    %451 = vmatpush1.msra.mxu0 0.0
    %452 = vmatprep.subr.mxu0 0.0
    %453 = vmatpush1.msra.mxu0 0.0
    %454 = vmatprep.subr.mxu0 0.0
    %455 = vmatpush1.msra.mxu0 0.0
    %456 = vmatprep.subr.mxu0 0.0
    %457 = vmatpush1.msra.mxu0 0.0
    %458 = vmatprep.subr.mxu0 0.0
    %459 = vmatpush1.msra.mxu0 0.0
    %460 = vmatprep.subr.mxu0 0.0
    %461 = vmatpush1.msra.mxu0 0.0
    %462 = vmatprep.subr.mxu0 0.0
    %463 = vmatpush1.msra.mxu0 0.0
    %464 = vmatprep.subr.mxu0 0.0
    %465 = vmatpush1.msra.mxu0 0.0
    %466 = vmatprep.subr.mxu0 0.0
    %467 = vmatpush1.msra.mxu0 0.0
    %468 = vmatprep.subr.mxu0 0.0
    %469 = vmatpush1.msra.mxu0 0.0
    %470 = vmatprep.subr.mxu0 0.0
    %471 = vmatpush1.msra.mxu0 0.0
    %472 = vmatprep.subr.mxu0 0.0
    %473 = vmatpush1.msra.mxu0 0.0
    %474 = vmatprep.subr.mxu0 0.0
    %475 = vmatpush1.msra.mxu0 0.0
    %476 = vmatprep.subr.mxu0 0.0
    %477 = vmatpush1.msra.mxu0 0.0
    %478 = vmatprep.subr.mxu0 0.0
    %479 = vmatpush1.msra.mxu0 0.0
    %480 = vmatprep.subr.mxu0 0.0
    %481 = vmatpush1.msra.mxu0 0.0
    %482 = vmatprep.subr.mxu0 0.0
    %483 = vmatpush1.msra.mxu0 0.0
    %484 = vmatprep.subr.mxu0 0.0
    %485 = vmatpush1.msra.mxu0 0.0
    %486 = vmatprep.subr.mxu0 0.0
    %487 = vmatpush1.msra.mxu0 0.0
    %488 = vmatprep.subr.mxu0 0.0
    %489 = vmatpush1.msra.mxu0 0.0
    %490 = vmatprep.subr.mxu0 0.0
    %491 = vmatpush1.msra.mxu0 0.0
    %492 = vmatprep.subr.mxu0 0.0
    %493 = vmatpush1.msra.mxu0 0.0
    %494 = vmatprep.subr.mxu0 0.0
    %495 = vmatpush1.msra.mxu0 0.0
    %496 = vmatprep.subr.mxu0 0.0
    %497 = vmatpush1.msra.mxu0 0.0
    %498 = vmatprep.subr.mxu0 0.0
    %499 = vmatpush1.msra.mxu0 0.0
    %500 = vmatprep.subr.mxu0 0.0
    %501 = vmatpush1.msra.mxu0 0.0
    %502 = vmatprep.subr.mxu0 0.0
    %503 = vmatpush1.msra.mxu0 0.0
    %504 = vmatprep.mubr.f32.mxu0 0.0
    %505 = vmatmul.mubr.f32.gmra.mrb[0].mxu0 %v438
    %v506 = vpop.f32.mrb[0].mxu0
    %v507 = vadd.f32 0.0, %v506
    %v508 = vpop.f32.mrb[0].mxu0
    %509 = vdwg.mxu0
    %510 = vst.msk [vmem:[#allocation10] sm:$0x3] %vm425, %v507
    // Predicated region
    $region46: #{attention_forward.1} parent=1 // pred_check
      _
    $region47: #{attention_forward.1} parent=1 // pred_check_branch
      %512 = sbr.rel (0) target = $region49
    $region48: #{attention_forward.1} parent=1 // pred_region
      %s514 = ssub.s32 32, 32
      %515 = vsyncadd [#allocation4], %s514
      %s517 = sshll.u32 [#allocation10], 4
      %s518 = int_to_ptr.vmem [resolvable:$true] %s517
      %520 = dma.vmem_to_hbm [thread:$0]  %s518, 32, %s7, [#allocation4]
    $region49: #{attention_forward.1} parent=1 // pred_fallthru
      _
    // Predicated region
    $region50: #{attention_forward.1} parent=1 // pred_check
      _
    $region51: #{attention_forward.1} parent=1 // pred_check_branch
      %522 = sbr.rel (0) target = $region53
    $region52: #{attention_forward.1} parent=1 // pred_region
      %523 = dma.done [#allocation4], 32
    $region53: #{attention_forward.1} parent=1 // pred_fallthru
      _
    %524 = vsyncpa [#allocation3], 1
    %525 = vsyncpa [#allocation6], 1
    %526 = vsyncpa [#allocation9], 1
    %527 = vsyncpa [#allocation4], 1

</llo_original>
